<compile_context>
chip_gen: v7x
topology: tpu7x:2x2x1
jax: 0.10.0
libtpu: 0.0.40
codegen_flags: <defaults>
</compile_context>

<pallas_src>
import functools

import jax
import jax.numpy as jnp
from jax.experimental import pallas as pl
from jax.experimental.pallas import tpu as pltpu


def _round_up(x, m):
    return (x + m - 1) // m * m


def attention_unit_kernel(enc_in_ref, dec_in_ref,
                          we_ref, be_ref, wd_ref, bd_ref, wa_ref,
                          out_ref, alpha_ref, *, n_valid):
    # enc_in_ref : (TB, Np, E)   dec_in_ref : (TB, D)
    TB, Np, E = enc_in_ref.shape
    A = we_ref.shape[1]

    # enc = Linear(E -> A)(encoded): one big (TB*Np, E) @ (E, A) MXU matmul
    # (inputs arrive already in the MXU dtype; f32 accumulation).
    x = enc_in_ref[...].reshape(TB * Np, E)
    enc = jnp.dot(x, we_ref[...], preferred_element_type=jnp.float32) + be_ref[...]
    enc = enc.reshape(TB, Np, A)                      # f32 accumulator, reused below

    # dec = Linear(D -> A)(decoded): (TB, D) @ (D, A)  (f32; tiny)
    dec = jnp.dot(dec_in_ref[...], wd_ref[...],
                  preferred_element_type=jnp.float32) + bd_ref[...]

    # attend = relu(enc + dec.unsqueeze(1))            (TB, Np, A)
    att = jnp.maximum(enc + dec[:, None, :], 0.0)

    # scores = Linear(A -> 1)(attend) as a VPU mul + lane reduce -> (TB, Np)
    # (the +ba bias is a constant shift: a no-op under softmax, so dropped)
    score = jnp.sum(att * wa_ref[...].reshape(1, 1, A), axis=2)

    # mask padded encoder positions (N was padded to the sublane tile)
    if n_valid < Np:
        pos = jax.lax.broadcasted_iota(jnp.int32, (TB, Np), 1)
        score = jnp.where(pos < n_valid, score, -jnp.inf)

    # softmax over the N (lane) axis
    m = jnp.max(score, axis=1, keepdims=True)
    e = jnp.exp(score - m)
    denom = jnp.sum(e, axis=1, keepdims=True)
    inv = pl.reciprocal(denom, approx=True)           # EUP slot (frees VALU)
    inv = inv * (2.0 - denom * inv)                   # 1 NR step -> f32 accuracy
    alpha = e * inv                                   # (TB, Np), f32

    # out = sum_N (enc * alpha): VPU multiply + sublane reduce, all f32.
    # (Avoids TB one-row MXU pushes of the previous batched einsum.)
    out = jnp.sum(enc * alpha[:, :, None], axis=1)    # (TB, A)

    out_ref[...] = out.astype(out_ref.dtype)
    alpha_ref[...] = alpha.astype(alpha_ref.dtype)    # lane-dense (TB, Np)


def attention_unit(encoded, decoded, params, *, block_b=None,
                   mxu_dtype=jnp.float32):
    """encoded: (B, N, E), decoded: (B, D) -> (out (B, A), alpha (B, N))."""
    B, N, E = encoded.shape
    D = decoded.shape[1]
    We, be, Wd, bd, Wa, ba = params
    A = We.shape[1]
    # ba shifts every score by the same constant -> identical alpha/out.
    del ba

    use_bf16 = (mxu_dtype == jnp.bfloat16)
    sub = 16 if use_bf16 else 8                 # sublane tile (bf16 packs 2/row)
    Np = _round_up(N, sub)                      # keep reshapes tile-aligned
    enc_bytes = 2 if use_bf16 else 4

    # ---- batch tile (TB) selection ---------------------------------------
    if block_b is None:
        # Per batch-row VMEM: double-buffered encoded row + f32 enc/att
        # intermediates + alpha/out rows.  24 MiB budget is safe on every
        # generation (v7x physical VMEM is 64 MiB).
        per_row = 2 * Np * E * enc_bytes + 2 * Np * A * 4 + (Np + A) * 8
        tb = max(sub, (24 * 1024 * 1024 // max(per_row, 1)) // sub * sub)
        if B >= 2 * sub:                        # keep >= 2 grid steps (v7x: 2 TCs)
            tb = min(tb, _round_up((B + 1) // 2, sub))
    else:
        tb = max(sub, (block_b // sub) * sub)
    tb = min(tb, _round_up(B, sub))
    Bp = _round_up(B, tb)

    # ---- padding + wrapper-side bf16 cast of the dominant stream ---------
    if Bp != B or Np != N:
        encoded = jnp.pad(encoded, ((0, Bp - B), (0, Np - N), (0, 0)))
        decoded = jnp.pad(decoded, ((0, Bp - B), (0, 0)))
    if use_bf16:
        encoded = encoded.astype(jnp.bfloat16)  # halves the dominant HBM DMA
        We = We.astype(jnp.bfloat16)            # native bf16 MXU matmul
    decoded = decoded.astype(jnp.float32)
    Wd = Wd.astype(jnp.float32)

    be2 = be.reshape(1, A).astype(jnp.float32)
    bd2 = bd.reshape(1, A).astype(jnp.float32)
    wa_row = Wa.reshape(1, A).astype(jnp.float32)   # (A, 1) weight as a lane row

    # ---- explicit VMEM limit (>= scoped default, <= v7x physical) --------
    est_vmem = (2 * tb * Np * E * enc_bytes            # encoded (double-buffered)
                + 2 * tb * D * 4                       # decoded
                + 2 * (E * A * enc_bytes + D * A * 4 + 3 * A * 4)  # weights/biases
                + 2 * tb * (A + Np) * 4                # outputs (double-buffered)
                + 3 * tb * Np * A * 4                  # enc/att intermediates
                + 2 * tb * Np * 4)                     # score/alpha
    vmem_limit = int(min(max(2 * est_vmem, 32 * 1024 * 1024), 56 * 1024 * 1024))

    flops = 2 * Bp * Np * E * A + 2 * Bp * D * A + 6 * Bp * Np * A + 8 * Bp * Np
    bytes_accessed = (Bp * Np * E * enc_bytes + Bp * D * 4
                      + E * A * enc_bytes + D * A * 4 + 3 * A * 4
                      + Bp * A * 4 + Bp * Np * 4)

    kernel = functools.partial(attention_unit_kernel, n_valid=N)

    out, alpha = pl.pallas_call(
        kernel,
        out_shape=(
            jax.ShapeDtypeStruct((Bp, A), jnp.float32),
            jax.ShapeDtypeStruct((Bp, Np), jnp.float32),
        ),
        grid_spec=pltpu.PrefetchScalarGridSpec(
            num_scalar_prefetch=0,
            grid=(Bp // tb,),
            in_specs=[
                pl.BlockSpec((tb, Np, E), lambda b: (b, 0, 0)),   # encoded tile
                pl.BlockSpec((tb, D), lambda b: (b, 0)),          # decoded tile
                pl.BlockSpec((E, A), lambda b: (0, 0)),           # We
                pl.BlockSpec((1, A), lambda b: (0, 0)),           # be
                pl.BlockSpec((D, A), lambda b: (0, 0)),           # Wd
                pl.BlockSpec((1, A), lambda b: (0, 0)),           # bd
                pl.BlockSpec((1, A), lambda b: (0, 0)),           # Wa row
            ],
            out_specs=[
                pl.BlockSpec((tb, A), lambda b: (b, 0)),          # out
                pl.BlockSpec((tb, Np), lambda b: (b, 0)),         # alpha (lane-dense)
            ],
        ),
        compiler_params=pltpu.CompilerParams(
            dimension_semantics=("parallel",),
            vmem_limit_bytes=vmem_limit),
        cost_estimate=pl.CostEstimate(flops=flops,
                                      transcendentals=Bp * Np,
                                      bytes_accessed=bytes_accessed),
    )(encoded, decoded, We, be2, Wd, bd2, wa_row)

    return out[:B], alpha[:B, :N]


def reference_attention_unit(encoded, decoded, params):
    We, be, Wd, bd, Wa, ba = params
    enc = encoded @ We + be                       # (B, N, A)
    dec = decoded @ Wd + bd                       # (B, A)
    att = jax.nn.relu(enc + dec[:, None, :])      # (B, N, A)
    score = (att @ Wa + ba)[..., 0]               # (B, N)
    alpha = jax.nn.softmax(score, axis=1)         # (B, N)
    out = (enc * alpha[..., None]).sum(axis=1)    # (B, A)
    return out, alpha


if __name__ == "__main__":
    # Small shapes consistent with the module's forward pass.
    B, N = 2, 8           # batch, number of encoder positions
    E, D, A = 16, 32, 32  # encoder_dim, decoder_dim, attention_dim

    key = jax.random.PRNGKey(0)
    k_enc, k_dec, k_we, k_be, k_wd, k_bd, k_wa, k_ba = jax.random.split(key, 8)

    encoded = jax.random.normal(k_enc, (B, N, E), jnp.float32)
    decoded = jax.random.normal(k_dec, (B, D), jnp.float32)

    # Deterministic synthetic parameters (stored as (in, out), i.e. W.T of nn.Linear).
    We = jax.random.normal(k_we, (E, A), jnp.float32) * 0.1
    be = jax.random.normal(k_be, (A,), jnp.float32) * 0.1
    Wd = jax.random.normal(k_wd, (D, A), jnp.float32) * 0.1
    bd = jax.random.normal(k_bd, (A,), jnp.float32) * 0.1
    Wa = jax.random.normal(k_wa, (A, 1), jnp.float32) * 0.1
    ba = jax.random.normal(k_ba, (1,), jnp.float32) * 0.1
    params = (We, be, Wd, bd, Wa, ba)

    ref_out, ref_alpha = reference_attention_unit(encoded, decoded, params)

    # f32 path (tight-tolerance check).
    out, alpha = attention_unit(encoded, decoded, params)
    out = jax.block_until_ready(out)
    alpha = jax.block_until_ready(alpha)
    assert out.shape == (B, A) and alpha.shape == (B, N)
    assert jnp.allclose(out, ref_out, atol=2e-5, rtol=2e-5)
    assert jnp.allclose(alpha, ref_alpha, atol=2e-5, rtol=2e-5)

    # bf16 fast path (wrapper-side cast of encoded/We, N padded to 16 + masked),
    # f32 accumulation everywhere downstream; looser tolerance.
    out_bf, alpha_bf = attention_unit(encoded, decoded, params,
                                      mxu_dtype=jnp.bfloat16)
    out_bf = jax.block_until_ready(out_bf)
    alpha_bf = jax.block_until_ready(alpha_bf)
    assert out_bf.shape == (B, A) and alpha_bf.shape == (B, N)
    assert jnp.allclose(out_bf, ref_out, atol=5e-2, rtol=5e-2)
    assert jnp.allclose(alpha_bf, ref_alpha, atol=5e-2, rtol=5e-2)

    print("KERNEL_OK")
</pallas_src>

<mosaic_0001>
module attributes {stable_mosaic.version = 11 : i64} {
  func.func @attention_unit_kernel(%arg0: i32, %arg1: memref<8x8x16xf32, #tpu.memory_space<vmem>>, %arg2: memref<8x32xf32, #tpu.memory_space<vmem>>, %arg3: memref<16x32xf32, #tpu.memory_space<vmem>>, %arg4: memref<1x32xf32, #tpu.memory_space<vmem>>, %arg5: memref<32x32xf32, #tpu.memory_space<vmem>>, %arg6: memref<1x32xf32, #tpu.memory_space<vmem>>, %arg7: memref<1x32xf32, #tpu.memory_space<vmem>>, %arg8: memref<8x32xf32, #tpu.memory_space<vmem>>, %arg9: memref<8x8xf32, #tpu.memory_space<vmem>>) attributes {dimension_semantics = [#tpu.dimension_semantics<parallel>], iteration_bounds = array<i64: 1>, scalar_prefetch = 0 : i64, scratch_operands = 0 : i64, tpu.core_type = #tpu.core_type<tc>, window_params = [{transform_indices = @transform_0, window_bounds = array<i64: 8, 8, 16>}, {transform_indices = @transform_1, window_bounds = array<i64: 8, 32>}, {pipeline_mode = #tpu.pipeline_mode<synchronous>, transform_indices = @transform_2, window_bounds = array<i64: 16, 32>}, {pipeline_mode = #tpu.pipeline_mode<synchronous>, transform_indices = @transform_3, window_bounds = array<i64: 1, 32>}, {pipeline_mode = #tpu.pipeline_mode<synchronous>, transform_indices = @transform_4, window_bounds = array<i64: 32, 32>}, {pipeline_mode = #tpu.pipeline_mode<synchronous>, transform_indices = @transform_5, window_bounds = array<i64: 1, 32>}, {pipeline_mode = #tpu.pipeline_mode<synchronous>, transform_indices = @transform_6, window_bounds = array<i64: 1, 32>}, {transform_indices = @transform_7, window_bounds = array<i64: 8, 32>}, {transform_indices = @transform_8, window_bounds = array<i64: 8, 8>}]} {
    %c0 = arith.constant 0 : index
    %c0_0 = arith.constant 0 : index
    %c0_1 = arith.constant 0 : index
    %0 = vector.load %arg1[%c0, %c0_0, %c0_1] : memref<8x8x16xf32, #tpu.memory_space<vmem>>, vector<8x8x16xf32>
    %1 = vector.shape_cast %0 : vector<8x8x16xf32> to vector<64x16xf32>
    %c0_2 = arith.constant 0 : index
    %c0_3 = arith.constant 0 : index
    %2 = vector.load %arg3[%c0_2, %c0_3] : memref<16x32xf32, #tpu.memory_space<vmem>>, vector<16x32xf32>
    %cst = arith.constant dense<0.000000e+00> : vector<64x32xf32>
    %3 = tpu.matmul %1, %2, %cst {dimension_numbers = #tpu.dot_dimension_numbers<[1], [0], [0], [1], [0, 0, 1, 1], [], []>} : vector<64x16xf32>, vector<16x32xf32>, vector<64x32xf32> -> vector<64x32xf32>
    %c0_4 = arith.constant 0 : index
    %c0_5 = arith.constant 0 : index
    %4 = vector.load %arg4[%c0_4, %c0_5] : memref<1x32xf32, #tpu.memory_space<vmem>>, vector<1x32xf32>
    %5 = vector.broadcast %4 : vector<1x32xf32> to vector<64x32xf32>
    %6 = arith.addf %3, %5 : vector<64x32xf32>
    %7 = vector.shape_cast %6 : vector<64x32xf32> to vector<8x8x32xf32>
    %c0_6 = arith.constant 0 : index
    %c0_7 = arith.constant 0 : index
    %8 = vector.load %arg2[%c0_6, %c0_7] : memref<8x32xf32, #tpu.memory_space<vmem>>, vector<8x32xf32>
    %c0_8 = arith.constant 0 : index
    %c0_9 = arith.constant 0 : index
    %9 = vector.load %arg5[%c0_8, %c0_9] : memref<32x32xf32, #tpu.memory_space<vmem>>, vector<32x32xf32>
    %cst_10 = arith.constant dense<0.000000e+00> : vector<8x32xf32>
    %10 = tpu.matmul %8, %9, %cst_10 {dimension_numbers = #tpu.dot_dimension_numbers<[1], [0], [0], [1], [0, 0, 1, 1], [], []>} : vector<8x32xf32>, vector<32x32xf32>, vector<8x32xf32> -> vector<8x32xf32>
    %c0_11 = arith.constant 0 : index
    %c0_12 = arith.constant 0 : index
    %11 = vector.load %arg6[%c0_11, %c0_12] : memref<1x32xf32, #tpu.memory_space<vmem>>, vector<1x32xf32>
    %12 = vector.broadcast %11 : vector<1x32xf32> to vector<8x32xf32>
    %13 = arith.addf %10, %12 : vector<8x32xf32>
    %14 = vector.shape_cast %13 : vector<8x32xf32> to vector<8x1x32xf32>
    %15 = vector.broadcast %14 : vector<8x1x32xf32> to vector<8x8x32xf32>
    %16 = arith.addf %7, %15 : vector<8x8x32xf32>
    %cst_13 = arith.constant 0.000000e+00 : f32
    %17 = vector.broadcast %cst_13 : f32 to vector<8x8x32xf32>
    %18 = arith.maximumf %16, %17 : vector<8x8x32xf32>
    %c0_14 = arith.constant 0 : index
    %c0_15 = arith.constant 0 : index
    %19 = vector.load %arg7[%c0_14, %c0_15] : memref<1x32xf32, #tpu.memory_space<vmem>>, vector<1x32xf32>
    %20 = vector.shape_cast %19 : vector<1x32xf32> to vector<1x1x32xf32>
    %21 = vector.broadcast %20 : vector<1x1x32xf32> to vector<8x8x32xf32>
    %22 = arith.mulf %18, %21 : vector<8x8x32xf32>
    %cst_16 = arith.constant dense<0.000000e+00> : vector<8x8xf32>
    %23 = vector.multi_reduction <add>, %22, %cst_16 [2] : vector<8x8x32xf32> to vector<8x8xf32>
    %cst_17 = arith.constant dense<0xFF800000> : vector<8xf32>
    %24 = vector.multi_reduction <maximumf>, %23, %cst_17 [1] : vector<8x8xf32> to vector<8xf32>
    %25 = vector.shape_cast %24 : vector<8xf32> to vector<8x1xf32>
    %26 = vector.broadcast %25 : vector<8x1xf32> to vector<8x8xf32>
    %27 = arith.subf %23, %26 : vector<8x8xf32>
    %28 = math.exp %27 : vector<8x8xf32>
    %cst_18 = arith.constant dense<0.000000e+00> : vector<8xf32>
    %29 = vector.multi_reduction <add>, %28, %cst_18 [1] : vector<8x8xf32> to vector<8xf32>
    %30 = vector.shape_cast %29 : vector<8xf32> to vector<8x1xf32>
    %31 = tpu.reciprocal %30 {approx = true} : vector<8x1xf32> -> vector<8x1xf32>
    %32 = arith.mulf %30, %31 : vector<8x1xf32>
    %cst_19 = arith.constant 2.000000e+00 : f32
    %33 = vector.broadcast %cst_19 : f32 to vector<8x1xf32>
    %34 = arith.subf %33, %32 : vector<8x1xf32>
    %35 = arith.mulf %31, %34 : vector<8x1xf32>
    %36 = vector.broadcast %35 : vector<8x1xf32> to vector<8x8xf32>
    %37 = arith.mulf %28, %36 : vector<8x8xf32>
    %38 = vector.shape_cast %37 : vector<8x8xf32> to vector<8x8x1xf32>
    %39 = vector.broadcast %38 : vector<8x8x1xf32> to vector<8x8x32xf32>
    %40 = arith.mulf %7, %39 : vector<8x8x32xf32>
    %cst_20 = arith.constant dense<0.000000e+00> : vector<8x32xf32>
    %41 = vector.multi_reduction <add>, %40, %cst_20 [1] : vector<8x8x32xf32> to vector<8x32xf32>
    %c0_21 = arith.constant 0 : index
    %c0_22 = arith.constant 0 : index
    %42 = vector.load %arg8[%c0_21, %c0_22] : memref<8x32xf32, #tpu.memory_space<vmem>>, vector<8x32xf32>
    tpu.vector_store %arg8[%c0_21, %c0_22], %41 {strides = array<i32>} : memref<8x32xf32, #tpu.memory_space<vmem>>, vector<8x32xf32>,
    %c0_23 = arith.constant 0 : index
    %c0_24 = arith.constant 0 : index
    %43 = vector.load %arg9[%c0_23, %c0_24] : memref<8x8xf32, #tpu.memory_space<vmem>>, vector<8x8xf32>
    tpu.vector_store %arg9[%c0_23, %c0_24], %37 {strides = array<i32>} : memref<8x8xf32, #tpu.memory_space<vmem>>, vector<8x8xf32>,
    return
  }
  func.func @transform_0(%arg0: i32) -> (i32, i32, i32) {
    %c0_i32 = arith.constant 0 : i32
    %c0_i32_0 = arith.constant 0 : i32
    %c0_i32_1 = arith.constant 0 : i32
    return %arg0, %c0_i32, %c0_i32_0 : i32, i32, i32
  }
  func.func @transform_1(%arg0: i32) -> (i32, i32) {
    %c0_i32 = arith.constant 0 : i32
    %c0_i32_0 = arith.constant 0 : i32
    return %arg0, %c0_i32 : i32, i32
  }
  func.func @transform_2(%arg0: i32) -> (i32, i32) {
    %c0_i32 = arith.constant 0 : i32
    %c0_i32_0 = arith.constant 0 : i32
    %c0_i32_1 = arith.constant 0 : i32
    return %c0_i32, %c0_i32_0 : i32, i32
  }
  func.func @transform_3(%arg0: i32) -> (i32, i32) {
    %c0_i32 = arith.constant 0 : i32
    %c0_i32_0 = arith.constant 0 : i32
    %c0_i32_1 = arith.constant 0 : i32
    return %c0_i32, %c0_i32_0 : i32, i32
  }
  func.func @transform_4(%arg0: i32) -> (i32, i32) {
    %c0_i32 = arith.constant 0 : i32
    %c0_i32_0 = arith.constant 0 : i32
    %c0_i32_1 = arith.constant 0 : i32
    return %c0_i32, %c0_i32_0 : i32, i32
  }
  func.func @transform_5(%arg0: i32) -> (i32, i32) {
    %c0_i32 = arith.constant 0 : i32
    %c0_i32_0 = arith.constant 0 : i32
    %c0_i32_1 = arith.constant 0 : i32
    return %c0_i32, %c0_i32_0 : i32, i32
  }
  func.func @transform_6(%arg0: i32) -> (i32, i32) {
    %c0_i32 = arith.constant 0 : i32
    %c0_i32_0 = arith.constant 0 : i32
    %c0_i32_1 = arith.constant 0 : i32
    return %c0_i32, %c0_i32_0 : i32, i32
  }
  func.func @transform_7(%arg0: i32) -> (i32, i32) {
    %c0_i32 = arith.constant 0 : i32
    %c0_i32_0 = arith.constant 0 : i32
    return %arg0, %c0_i32 : i32, i32
  }
  func.func @transform_8(%arg0: i32) -> (i32, i32) {
    %c0_i32 = arith.constant 0 : i32
    %c0_i32_0 = arith.constant 0 : i32
    return %arg0, %c0_i32 : i32, i32
  }
}

</mosaic_0001>

<llo_original>
// kernel: tpu_custom_call.1
$region0: #{tpu_custom_call.1}
  #allocation0 [shape = 'u32[]', space=smem, size = 0x4, offset = 0x4, fixed_abs, tag = 'smem constant byte address 0x4 - core index']
  #allocation1 [shape = 'u32[144,128]{1,0:T(1,128)}', space=vmem, size = 0x12000, scoped, tag = 'internal scratch']
  %s0 = inlined_call_operand.hbm [shape: f32[8,8,16], index: 0, kind: input, shape index: {}]
  %s1 = inlined_call_operand.hbm [shape: f32[8,32], index: 1, kind: input, shape index: {}]
  %s2 = inlined_call_operand.hbm [shape: f32[16,32], index: 2, kind: input, shape index: {}]
  %s3 = inlined_call_operand.vmem [shape: f32[1,32], index: 3, kind: input, shape index: {}]
  %s4 = inlined_call_operand.hbm [shape: f32[32,32], index: 4, kind: input, shape index: {}]
  %s5 = inlined_call_operand.vmem [shape: f32[1,32], index: 5, kind: input, shape index: {}]
  %s6 = inlined_call_operand.vmem [shape: f32[1,32], index: 6, kind: input, shape index: {}]
  %s7 = inlined_call_operand.hbm [shape: f32[8,32], index: 7, kind: output, shape index: {0}]
  %s8 = inlined_call_operand.hbm [shape: f32[8,8], index: 8, kind: output, shape index: {1}]
  %9 = xla_tuple %s7, %s8
  %s10 = sld [smem:[#allocation0]]
  $region62: #{tpu_custom_call.1} parent=0
    _
  %s12 = ssub.s32 1, %s10
  %s13 = scalar_select 0, %s12, %s10
  $region1: #{tpu_custom_call.1} parent=0
    #allocation2 [shape = 'u8[32768]{0}', space=vmem, size = 0x8000, scoped, tag = 'input window, operand 0, single buffered']
    #allocation3 [shape = 's32[1]{0}', space=sflag, size = 0x4, scoped, tag = 'scoped memory for tpu_custom_call.1']
    #allocation4 [shape = 's32[1]{0}', space=sflag, size = 0x4, scoped, tag = 'scoped memory for tpu_custom_call.1']
    #allocation5 [shape = 'u8[4096]{0}', space=vmem, size = 0x1000, scoped, tag = 'input window, operand 1, single buffered']
    #allocation6 [shape = 's32[1]{0}', space=sflag, size = 0x4, scoped, tag = 'scoped memory for tpu_custom_call.1']
    #allocation7 [shape = 'u8[8192]{0}', space=vmem, size = 0x2000, scoped, tag = 'input window, operand 2, single buffered']
    #allocation8 [shape = 'u8[16384]{0}', space=vmem, size = 0x4000, scoped, tag = 'input window, operand 4, single buffered']
    #allocation9 [shape = 's32[1]{0}', space=sflag, size = 0x4, scoped, tag = 'scoped memory for tpu_custom_call.1']
    #allocation10 [shape = 'u8[4096]{0}', space=vmem, size = 0x1000, scoped, tag = 'output window, operand 0, single buffered']
    #allocation11 [shape = 'u8[4096]{0}', space=vmem, size = 0x1000, scoped, tag = 'output window, operand 1, single buffered']
    #allocation12 [shape = 's32[1]{0}', space=sflag, size = 0x4, scoped, tag = 'scoped memory for tpu_custom_call.1']
    %14 = vsyncpa [#allocation3], 0
    %15 = vsyncpa [#allocation6], 0
    %16 = vsyncpa [#allocation9], 0
    %17 = vsyncpa [#allocation4], 0
    %18 = vsyncpa [#allocation12], 0
    // Predicated region
    $region2: #{tpu_custom_call.1} parent=1 // pred_check
      _
    $region3: #{tpu_custom_call.1} parent=1 // pred_check_branch
      %20 = sbr.rel (0) target = $region5
    $region4: #{tpu_custom_call.1} parent=1 // pred_region
      %s22 = ssub.s32 1024, 1024
      %23 = vsyncadd [#allocation3], %s22
      %s24 = sshll.u32 [#allocation2], 4
      %s25 = int_to_ptr.vmem [resolvable:$true] %s24
      %30 = dma.hbm_to_vmem [thread:$0]  %s0, 1024, %s25, [#allocation3], 128, 128, 8
    $region5: #{tpu_custom_call.1} parent=1 // pred_fallthru
      _
    // Predicated region
    $region6: #{tpu_custom_call.1} parent=1 // pred_check
      _
    $region7: #{tpu_custom_call.1} parent=1 // pred_check_branch
      %32 = sbr.rel (0) target = $region9
    $region8: #{tpu_custom_call.1} parent=1 // pred_region
      %s34 = ssub.s32 128, 128
      %35 = vsyncadd [#allocation6], %s34
      %s37 = sshll.u32 [#allocation5], 4
      %s38 = int_to_ptr.vmem [resolvable:$true] %s37
      %40 = dma.hbm_to_vmem [thread:$0]  %s1, 128, %s38, [#allocation6]
    $region9: #{tpu_custom_call.1} parent=1 // pred_fallthru
      _
    // Predicated region
    $region10: #{tpu_custom_call.1} parent=1 // pred_check
      _
    $region11: #{tpu_custom_call.1} parent=1 // pred_check_branch
      %42 = sbr.rel (0) target = $region13
    $region12: #{tpu_custom_call.1} parent=1 // pred_region
      %s44 = ssub.s32 256, 256
      %45 = vsyncadd [#allocation6], %s44
      %s46 = sshll.u32 [#allocation7], 4
      %s47 = int_to_ptr.vmem [resolvable:$true] %s46
      %52 = dma.hbm_to_vmem [thread:$0]  %s2, 256, %s47, [#allocation6], 128, 128, 8
    $region13: #{tpu_custom_call.1} parent=1 // pred_fallthru
      _
    // Predicated region
    $region14: #{tpu_custom_call.1} parent=1 // pred_check
      _
    $region15: #{tpu_custom_call.1} parent=1 // pred_check_branch
      %54 = sbr.rel (0) target = $region17
    $region16: #{tpu_custom_call.1} parent=1 // pred_region
      _
    $region17: #{tpu_custom_call.1} parent=1 // pred_fallthru
      _
    // Predicated region
    $region18: #{tpu_custom_call.1} parent=1 // pred_check
      _
    $region19: #{tpu_custom_call.1} parent=1 // pred_check_branch
      %56 = sbr.rel (0) target = $region21
    $region20: #{tpu_custom_call.1} parent=1 // pred_region
      %s58 = ssub.s32 512, 512
      %59 = vsyncadd [#allocation9], %s58
      %s60 = sshll.u32 [#allocation8], 4
      %s61 = int_to_ptr.vmem [resolvable:$true] %s60
      %66 = dma.hbm_to_vmem [thread:$0]  %s4, 512, %s61, [#allocation9], 128, 128, 8
    $region21: #{tpu_custom_call.1} parent=1 // pred_fallthru
      _
    // Predicated region
    $region22: #{tpu_custom_call.1} parent=1 // pred_check
      _
    $region23: #{tpu_custom_call.1} parent=1 // pred_check_branch
      %68 = sbr.rel (0) target = $region25
    $region24: #{tpu_custom_call.1} parent=1 // pred_region
      _
    $region25: #{tpu_custom_call.1} parent=1 // pred_fallthru
      _
    // Predicated region
    $region26: #{tpu_custom_call.1} parent=1 // pred_check
      _
    $region27: #{tpu_custom_call.1} parent=1 // pred_check_branch
      %70 = sbr.rel (0) target = $region29
    $region28: #{tpu_custom_call.1} parent=1 // pred_region
      _
    $region29: #{tpu_custom_call.1} parent=1 // pred_fallthru
      _
    // Predicated region
    $region30: #{tpu_custom_call.1} parent=1 // pred_check
      _
    $region31: #{tpu_custom_call.1} parent=1 // pred_check_branch
      %72 = sbr.rel (0) target = $region33
    $region32: #{tpu_custom_call.1} parent=1 // pred_region
      %73 = dma.done [#allocation3], 1024
    $region33: #{tpu_custom_call.1} parent=1 // pred_fallthru
      _
    // Predicated region
    $region34: #{tpu_custom_call.1} parent=1 // pred_check
      _
    $region35: #{tpu_custom_call.1} parent=1 // pred_check_branch
      %75 = sbr.rel (0) target = $region37
    $region36: #{tpu_custom_call.1} parent=1 // pred_region
      %76 = dma.done [#allocation6], 128
    $region37: #{tpu_custom_call.1} parent=1 // pred_fallthru
      _
    // Predicated region
    $region38: #{tpu_custom_call.1} parent=1 // pred_check
      _
    $region39: #{tpu_custom_call.1} parent=1 // pred_check_branch
      %78 = sbr.rel (0) target = $region41
    $region40: #{tpu_custom_call.1} parent=1 // pred_region
      %79 = dma.done [#allocation6], 256
    $region41: #{tpu_custom_call.1} parent=1 // pred_fallthru
      _
    // Predicated region
    $region42: #{tpu_custom_call.1} parent=1 // pred_check
      _
    $region43: #{tpu_custom_call.1} parent=1 // pred_check_branch
      %81 = sbr.rel (0) target = $region45
    $region44: #{tpu_custom_call.1} parent=1 // pred_region
      %82 = dma.done [#allocation9], 512
    $region45: #{tpu_custom_call.1} parent=1 // pred_fallthru
      _
    %v83 = vld [vmem:[#allocation2] sm:$0xff]
    %v84 = vld [vmem:[#allocation2 + $0x8] sm:$0xff]
    %v85 = vld [vmem:[#allocation2 + $0x10] sm:$0xff]
    %v86 = vld [vmem:[#allocation2 + $0x18] sm:$0xff]
    %v87 = vld [vmem:[#allocation2 + $0x20] sm:$0xff]
    %v88 = vld [vmem:[#allocation2 + $0x28] sm:$0xff]
    %v89 = vld [vmem:[#allocation2 + $0x30] sm:$0xff]
    %v90 = vld [vmem:[#allocation2 + $0x38] sm:$0xff]
    %v91 = vld [vmem:[#allocation7] sm:$0xff]
    %v92 = vld [vmem:[#allocation7 + $0x8] sm:$0xff]
    %v93 = vld [vmem:[%s3] sm:$0x1]
    %v95 = vlaneseq
    %v96 = vshrl.u32 %v95, 7
    %v97 = vsub.s32 0, %v96
    %v98 = vrot.slane %v93, %v97
    %vm100 = vcmask 130048
    %v102 = vsel %vm100, %v83, 0
    %v105 = vsel %vm100, %v84, 0
    %v108 = vsel %vm100, %v85, 0
    %v111 = vsel %vm100, %v86, 0
    %v114 = vsel %vm100, %v87, 0
    %v117 = vsel %vm100, %v88, 0
    %v120 = vsel %vm100, %v89, 0
    %v123 = vsel %vm100, %v90, 0
    %125 = vmatprep.subr.mxu0 0.0
    %126 = vmatpush1.msra.mxu0 %v91
    %127 = vmatprep.subr.mxu0 0.0
    %128 = vmatpush1.msra.mxu0 %v92
    %129 = vmatprep.subr.mxu0 0.0
    %130 = vmatpush1.msra.mxu0 0.0
    %131 = vmatprep.subr.mxu0 0.0
    %132 = vmatpush1.msra.mxu0 0.0
    %133 = vmatprep.subr.mxu0 0.0
    %134 = vmatpush1.msra.mxu0 0.0
    %135 = vmatprep.subr.mxu0 0.0
    %136 = vmatpush1.msra.mxu0 0.0
    %137 = vmatprep.subr.mxu0 0.0
    %138 = vmatpush1.msra.mxu0 0.0
    %139 = vmatprep.subr.mxu0 0.0
    %140 = vmatpush1.msra.mxu0 0.0
    %141 = vmatprep.subr.mxu0 0.0
    %142 = vmatpush1.msra.mxu0 0.0
    %143 = vmatprep.subr.mxu0 0.0
    %144 = vmatpush1.msra.mxu0 0.0
    %145 = vmatprep.subr.mxu0 0.0
    %146 = vmatpush1.msra.mxu0 0.0
    %147 = vmatprep.subr.mxu0 0.0
    %148 = vmatpush1.msra.mxu0 0.0
    %149 = vmatprep.subr.mxu0 0.0
    %150 = vmatpush1.msra.mxu0 0.0
    %151 = vmatprep.subr.mxu0 0.0
    %152 = vmatpush1.msra.mxu0 0.0
    %153 = vmatprep.subr.mxu0 0.0
    %154 = vmatpush1.msra.mxu0 0.0
    %155 = vmatprep.subr.mxu0 0.0
    %156 = vmatpush1.msra.mxu0 0.0
    %157 = vmatprep.subr.mxu0 0.0
    %158 = vmatpush1.msra.mxu0 0.0
    %159 = vmatprep.subr.mxu0 0.0
    %160 = vmatpush1.msra.mxu0 0.0
    %161 = vmatprep.subr.mxu0 0.0
    %162 = vmatpush1.msra.mxu0 0.0
    %163 = vmatprep.subr.mxu0 0.0
    %164 = vmatpush1.msra.mxu0 0.0
    %165 = vmatprep.subr.mxu0 0.0
    %166 = vmatpush1.msra.mxu0 0.0
    %167 = vmatprep.subr.mxu0 0.0
    %168 = vmatpush1.msra.mxu0 0.0
    %169 = vmatprep.subr.mxu0 0.0
    %170 = vmatpush1.msra.mxu0 0.0
    %171 = vmatprep.subr.mxu0 0.0
    %172 = vmatpush1.msra.mxu0 0.0
    %173 = vmatprep.subr.mxu0 0.0
    %174 = vmatpush1.msra.mxu0 0.0
    %175 = vmatprep.subr.mxu0 0.0
    %176 = vmatpush1.msra.mxu0 0.0
    %177 = vmatprep.subr.mxu0 0.0
    %178 = vmatpush1.msra.mxu0 0.0
    %179 = vmatprep.subr.mxu0 0.0
    %180 = vmatpush1.msra.mxu0 0.0
    %181 = vmatprep.subr.mxu0 0.0
    %182 = vmatpush1.msra.mxu0 0.0
    %183 = vmatprep.subr.mxu0 0.0
    %184 = vmatpush1.msra.mxu0 0.0
    %185 = vmatprep.subr.mxu0 0.0
    %186 = vmatpush1.msra.mxu0 0.0
    %187 = vmatprep.subr.mxu0 0.0
    %188 = vmatpush1.msra.mxu0 0.0
    %189 = vmatprep.mubr.f32.mxu0 0.0
    %190 = vmatmul.mubr.f32.gmra.mrb[0].mxu0 %v102
    %v191 = vpop.f32.mrb[0].mxu0
    %v192 = vadd.f32 %v98, %v191
    %v193 = vpop.f32.mrb[0].mxu0
    %194 = vmatprep.mubr.f32.mxu0 0.0
    %195 = vmatmul.mubr.f32.gmra.mrb[0].mxu0 %v105
    %v196 = vpop.f32.mrb[0].mxu0
    %v197 = vadd.f32 %v98, %v196
    %v198 = vpop.f32.mrb[0].mxu0
    %199 = vmatprep.mubr.f32.mxu0 0.0
    %200 = vmatmul.mubr.f32.gmra.mrb[0].mxu0 %v108
    %v201 = vpop.f32.mrb[0].mxu0
    %v202 = vadd.f32 %v98, %v201
    %v203 = vpop.f32.mrb[0].mxu0
    %204 = vmatprep.mubr.f32.mxu0 0.0
    %205 = vmatmul.mubr.f32.gmra.mrb[0].mxu0 %v111
    %v206 = vpop.f32.mrb[0].mxu0
    %v207 = vadd.f32 %v98, %v206
    %v208 = vpop.f32.mrb[0].mxu0
    %209 = vmatprep.mubr.f32.mxu0 0.0
    %210 = vmatmul.mubr.f32.gmra.mrb[0].mxu0 %v114
    %v211 = vpop.f32.mrb[0].mxu0
    %v212 = vadd.f32 %v98, %v211
    %v213 = vpop.f32.mrb[0].mxu0
    %214 = vmatprep.mubr.f32.mxu0 0.0
    %215 = vmatmul.mubr.f32.gmra.mrb[0].mxu0 %v117
    %v216 = vpop.f32.mrb[0].mxu0
    %v217 = vadd.f32 %v98, %v216
    %v218 = vpop.f32.mrb[0].mxu0
    %219 = vmatprep.mubr.f32.mxu0 0.0
    %220 = vmatmul.mubr.f32.gmra.mrb[0].mxu0 %v120
    %v221 = vpop.f32.mrb[0].mxu0
    %v222 = vadd.f32 %v98, %v221
    %v223 = vpop.f32.mrb[0].mxu0
    %224 = vmatprep.mubr.f32.mxu0 0.0
    %225 = vmatmul.mubr.f32.gmra.mrb[0].mxu0 %v123
    %v226 = vpop.f32.mrb[0].mxu0
    %v227 = vadd.f32 %v98, %v226
    %v228 = vpop.f32.mrb[0].mxu0
    %229 = vdwg.mxu0
    %v230 = vld [vmem:[#allocation5] sm:$0xff]
    %v231 = vld [vmem:[#allocation8] sm:$0xff]
    %v232 = vld [vmem:[#allocation8 + $0x8] sm:$0xff]
    %v233 = vld [vmem:[#allocation8 + $0x10] sm:$0xff]
    %v234 = vld [vmem:[#allocation8 + $0x18] sm:$0xff]
    %v235 = vld [vmem:[%s5] sm:$0x1]
    %v237 = vlaneseq
    %v238 = vshrl.u32 %v237, 7
    %v239 = vsub.s32 0, %v238
    %v240 = vrot.slane %v235, %v239
    %vm242 = vcmask 261120
    %v244 = vsel %vm242, %v230, 0
    %246 = vmatprep.subr.mxu0 0.0
    %247 = vmatpush1.msra.mxu0 %v231
    %248 = vmatprep.subr.mxu0 0.0
    %249 = vmatpush1.msra.mxu0 %v232
    %250 = vmatprep.subr.mxu0 0.0
    %251 = vmatpush1.msra.mxu0 %v233
    %252 = vmatprep.subr.mxu0 0.0
    %253 = vmatpush1.msra.mxu0 %v234
    %254 = vmatprep.subr.mxu0 0.0
    %255 = vmatpush1.msra.mxu0 0.0
    %256 = vmatprep.subr.mxu0 0.0
    %257 = vmatpush1.msra.mxu0 0.0
    %258 = vmatprep.subr.mxu0 0.0
    %259 = vmatpush1.msra.mxu0 0.0
    %260 = vmatprep.subr.mxu0 0.0
    %261 = vmatpush1.msra.mxu0 0.0
    %262 = vmatprep.subr.mxu0 0.0
    %263 = vmatpush1.msra.mxu0 0.0
    %264 = vmatprep.subr.mxu0 0.0
    %265 = vmatpush1.msra.mxu0 0.0
    %266 = vmatprep.subr.mxu0 0.0
    %267 = vmatpush1.msra.mxu0 0.0
    %268 = vmatprep.subr.mxu0 0.0
    %269 = vmatpush1.msra.mxu0 0.0
    %270 = vmatprep.subr.mxu0 0.0
    %271 = vmatpush1.msra.mxu0 0.0
    %272 = vmatprep.subr.mxu0 0.0
    %273 = vmatpush1.msra.mxu0 0.0
    %274 = vmatprep.subr.mxu0 0.0
    %275 = vmatpush1.msra.mxu0 0.0
    %276 = vmatprep.subr.mxu0 0.0
    %277 = vmatpush1.msra.mxu0 0.0
    %278 = vmatprep.subr.mxu0 0.0
    %279 = vmatpush1.msra.mxu0 0.0
    %280 = vmatprep.subr.mxu0 0.0
    %281 = vmatpush1.msra.mxu0 0.0
    %282 = vmatprep.subr.mxu0 0.0
    %283 = vmatpush1.msra.mxu0 0.0
    %284 = vmatprep.subr.mxu0 0.0
    %285 = vmatpush1.msra.mxu0 0.0
    %286 = vmatprep.subr.mxu0 0.0
    %287 = vmatpush1.msra.mxu0 0.0
    %288 = vmatprep.subr.mxu0 0.0
    %289 = vmatpush1.msra.mxu0 0.0
    %290 = vmatprep.subr.mxu0 0.0
    %291 = vmatpush1.msra.mxu0 0.0
    %292 = vmatprep.subr.mxu0 0.0
    %293 = vmatpush1.msra.mxu0 0.0
    %294 = vmatprep.subr.mxu0 0.0
    %295 = vmatpush1.msra.mxu0 0.0
    %296 = vmatprep.subr.mxu0 0.0
    %297 = vmatpush1.msra.mxu0 0.0
    %298 = vmatprep.subr.mxu0 0.0
    %299 = vmatpush1.msra.mxu0 0.0
    %300 = vmatprep.subr.mxu0 0.0
    %301 = vmatpush1.msra.mxu0 0.0
    %302 = vmatprep.subr.mxu0 0.0
    %303 = vmatpush1.msra.mxu0 0.0
    %304 = vmatprep.subr.mxu0 0.0
    %305 = vmatpush1.msra.mxu0 0.0
    %306 = vmatprep.subr.mxu0 0.0
    %307 = vmatpush1.msra.mxu0 0.0
    %308 = vmatprep.subr.mxu0 0.0
    %309 = vmatpush1.msra.mxu0 0.0
    %310 = vmatprep.mubr.f32.mxu0 0.0
    %311 = vmatmul.mubr.f32.gmra.mrb[0].mxu0 %v244
    %v312 = vpop.f32.mrb[0].mxu0
    %v313 = vadd.f32 %v240, %v312
    %v314 = vpop.f32.mrb[0].mxu0
    %315 = vdwg.mxu0
    %v317 = vcombine.high %v313, %v313
    %v319 = vunpack.c.l.s4 1966171168
    %v320 = vunpack.c.0.s8 %v319
    %v321 = vlaneseq
    %v322 = vshrl.u32 %v321, 7
    %v323 = vsub.s32 %v320, %v322
    %v324 = vrot.slane %v313, %v323
    %v326 = vunpack.c.l.s4 1966171168
    %v327 = vunpack.c.0.s8 %v326
    %v328 = vlaneseq
    %v329 = vshrl.u32 %v328, 7
    %v330 = vsub.s32 %v327, %v329
    %v331 = vrot.slane %v317, %v330
    %v332 = vcombine.high %v324, %v324
    %v333 = vcombine.high %v331, %v331
    %v335 = vunpack.c.l.s4 1966171168
    %v336 = vunpack.c.0.s8 %v335
    %v337 = vlaneseq
    %v338 = vshrl.u32 %v337, 7
    %v339 = vsub.s32 %v336, %v338
    %v340 = vrot.slane %v324, %v339
    %v342 = vunpack.c.l.s4 1966171168
    %v343 = vunpack.c.0.s8 %v342
    %v344 = vlaneseq
    %v345 = vshrl.u32 %v344, 7
    %v346 = vsub.s32 %v343, %v345
    %v347 = vrot.slane %v331, %v346
    %v349 = vunpack.c.l.s4 1966171168
    %v350 = vunpack.c.0.s8 %v349
    %v351 = vlaneseq
    %v352 = vshrl.u32 %v351, 7
    %v353 = vsub.s32 %v350, %v352
    %v354 = vrot.slane %v332, %v353
    %v356 = vunpack.c.l.s4 1966171168
    %v357 = vunpack.c.0.s8 %v356
    %v358 = vlaneseq
    %v359 = vshrl.u32 %v358, 7
    %v360 = vsub.s32 %v357, %v359
    %v361 = vrot.slane %v333, %v360
    %v362 = vcombine.high %v340, %v340
    %v363 = vcombine.high %v347, %v347
    %v364 = vcombine.high %v354, %v354
    %v365 = vcombine.high %v361, %v361
    %v366 = vlaneseq
    %v367 = vshrl.u32 %v366, 7
    %v368 = vsub.s32 0, %v367
    %v369 = vrot.slane %v340, %v368
    %v370 = vlaneseq
    %v371 = vshrl.u32 %v370, 7
    %v372 = vsub.s32 0, %v371
    %v373 = vrot.slane %v354, %v372
    %v374 = vlaneseq
    %v375 = vshrl.u32 %v374, 7
    %v376 = vsub.s32 0, %v375
    %v377 = vrot.slane %v362, %v376
    %v378 = vlaneseq
    %v379 = vshrl.u32 %v378, 7
    %v380 = vsub.s32 0, %v379
    %v381 = vrot.slane %v364, %v380
    %v382 = vlaneseq
    %v383 = vshrl.u32 %v382, 7
    %v384 = vsub.s32 0, %v383
    %v385 = vrot.slane %v347, %v384
    %v386 = vlaneseq
    %v387 = vshrl.u32 %v386, 7
    %v388 = vsub.s32 0, %v387
    %v389 = vrot.slane %v361, %v388
    %v390 = vlaneseq
    %v391 = vshrl.u32 %v390, 7
    %v392 = vsub.s32 0, %v391
    %v393 = vrot.slane %v363, %v392
    %v394 = vlaneseq
    %v395 = vshrl.u32 %v394, 7
    %v396 = vsub.s32 0, %v395
    %v397 = vrot.slane %v365, %v396
    %v406 = vadd.f32 %v192, %v369
    %v407 = vadd.f32 %v197, %v373
    %v408 = vadd.f32 %v202, %v377
    %v409 = vadd.f32 %v207, %v381
    %v410 = vadd.f32 %v212, %v385
    %v411 = vadd.f32 %v217, %v389
    %v412 = vadd.f32 %v222, %v393
    %v413 = vadd.f32 %v227, %v397
    %v414 = vmax.f32 %v406, 0.0
    %v415 = vmax.f32 %v407, 0.0
    %v416 = vmax.f32 %v408, 0.0
    %v417 = vmax.f32 %v409, 0.0
    %v418 = vmax.f32 %v410, 0.0
    %v419 = vmax.f32 %v411, 0.0
    %v420 = vmax.f32 %v412, 0.0
    %v421 = vmax.f32 %v413, 0.0
    %v422 = vld [vmem:[%s6] sm:$0x1]
    %v424 = vlaneseq
    %v425 = vshrl.u32 %v424, 7
    %v426 = vsub.s32 0, %v425
    %v427 = vrot.slane %v422, %v426
    %v429 = vmul.f32 %v414, %v427
    %v430 = vmul.f32 %v415, %v427
    %v431 = vmul.f32 %v416, %v427
    %v432 = vmul.f32 %v417, %v427
    %v433 = vmul.f32 %v418, %v427
    %v434 = vmul.f32 %v419, %v427
    %v435 = vmul.f32 %v420, %v427
    %v436 = vmul.f32 %v421, %v427
    %v437 = vsel %vm242, %v429, 0.0
    %438 = vadd.xlane.f32.xlu0 %v437
    %v439 = vpop.xlane.xlu0 %438
    %v440 = vsel %vm242, %v430, 0.0
    %441 = vadd.xlane.f32.xlu0 %v440
    %v442 = vpop.xlane.xlu0 %441
    %v443 = vsel %vm242, %v431, 0.0
    %444 = vadd.xlane.f32.xlu0 %v443
    %v445 = vpop.xlane.xlu0 %444
    %v446 = vsel %vm242, %v432, 0.0
    %447 = vadd.xlane.f32.xlu0 %v446
    %v448 = vpop.xlane.xlu0 %447
    %v449 = vsel %vm242, %v433, 0.0
    %450 = vadd.xlane.f32.xlu0 %v449
    %v451 = vpop.xlane.xlu0 %450
    %v452 = vsel %vm242, %v434, 0.0
    %453 = vadd.xlane.f32.xlu0 %v452
    %v454 = vpop.xlane.xlu0 %453
    %v455 = vsel %vm242, %v435, 0.0
    %456 = vadd.xlane.f32.xlu0 %v455
    %v457 = vpop.xlane.xlu0 %456
    %v458 = vsel %vm242, %v436, 0.0
    %459 = vadd.xlane.f32.xlu0 %v458
    %v460 = vpop.xlane.xlu0 %459
    %v469 = vlaneseq
    %v470 = vand.u32 %v469, 127
    %v471 = vlaneseq
    %v472 = vshrl.u32 %v471, 7
    %v473 = vsub.s32 %v470, %v472
    %v474 = vrot.slane %v439, %v473
    %v475 = vlaneseq
    %v476 = vshrl.u32 %v475, 7
    %v477 = vsub.s32 %v470, %v476
    %v478 = vrot.slane %v442, %v477
    %v479 = vlaneseq
    %v480 = vshrl.u32 %v479, 7
    %v481 = vsub.s32 %v470, %v480
    %v482 = vrot.slane %v445, %v481
    %v483 = vlaneseq
    %v484 = vshrl.u32 %v483, 7
    %v485 = vsub.s32 %v470, %v484
    %v486 = vrot.slane %v448, %v485
    %v487 = vlaneseq
    %v488 = vshrl.u32 %v487, 7
    %v489 = vsub.s32 %v470, %v488
    %v490 = vrot.slane %v451, %v489
    %v491 = vlaneseq
    %v492 = vshrl.u32 %v491, 7
    %v493 = vsub.s32 %v470, %v492
    %v494 = vrot.slane %v454, %v493
    %v495 = vlaneseq
    %v496 = vshrl.u32 %v495, 7
    %v497 = vsub.s32 %v470, %v496
    %v498 = vrot.slane %v457, %v497
    %v499 = vlaneseq
    %v500 = vshrl.u32 %v499, 7
    %v501 = vsub.s32 %v470, %v500
    %v502 = vrot.slane %v460, %v501
    %vm503 = vcmask 1041409
    %v504 = vsel %vm503, %v478, %v474
    %vm505 = vcmask 1042434
    %v506 = vsel %vm505, %v482, %v504
    %vm507 = vcmask 1043459
    %v508 = vsel %vm507, %v486, %v506
    %vm509 = vcmask 1044484
    %v510 = vsel %vm509, %v490, %v508
    %vm511 = vcmask 1045509
    %v512 = vsel %vm511, %v494, %v510
    %vm513 = vcmask 1046534
    %v514 = vsel %vm513, %v498, %v512
    %vm515 = vcmask 1047559
    %v516 = vsel %vm515, %v502, %v514
    %vm518 = vcmask 64512
    %v519 = vsel %vm518, %v516, -inf
    %520 = vmax.xlane.f32.xlu0 %v519
    %v521 = vpop.xlane.xlu0 %520
    %v523 = vlaneseq
    %v524 = vshrl.u32 %v523, 7
    %v525 = vsub.s32 0, %v524
    %v526 = vrot.slane %v521, %v525
    %v527 = vlaneseq
    %v528 = vshrl.u32 %v527, 7
    %v529 = vsub.s32 1, %v528
    %v530 = vrot.slane %v521, %v529
    %v531 = vlaneseq
    %v532 = vshrl.u32 %v531, 7
    %v533 = vsub.s32 2, %v532
    %v534 = vrot.slane %v521, %v533
    %v535 = vlaneseq
    %v536 = vshrl.u32 %v535, 7
    %v537 = vsub.s32 3, %v536
    %v538 = vrot.slane %v521, %v537
    %v539 = vlaneseq
    %v540 = vshrl.u32 %v539, 7
    %v541 = vsub.s32 4, %v540
    %v542 = vrot.slane %v521, %v541
    %v543 = vlaneseq
    %v544 = vshrl.u32 %v543, 7
    %v545 = vsub.s32 5, %v544
    %v546 = vrot.slane %v521, %v545
    %v547 = vlaneseq
    %v548 = vshrl.u32 %v547, 7
    %v549 = vsub.s32 6, %v548
    %v550 = vrot.slane %v521, %v549
    %v551 = vlaneseq
    %v552 = vshrl.u32 %v551, 7
    %v553 = vsub.s32 7, %v552
    %v554 = vrot.slane %v521, %v553
    %v563 = vsub.f32 %v439, %v526
    %v564 = vsub.f32 %v442, %v530
    %v565 = vsub.f32 %v445, %v534
    %v566 = vsub.f32 %v448, %v538
    %v567 = vsub.f32 %v451, %v542
    %v568 = vsub.f32 %v454, %v546
    %v569 = vsub.f32 %v457, %v550
    %v570 = vsub.f32 %v460, %v554
    %v571 = vmul.f32 %v563, 1.442695
    %v572 = vpow.pop %v571
    %v573 = vmul.f32 %v564, 1.442695
    %v574 = vpow.pop %v573
    %v575 = vmul.f32 %v565, 1.442695
    %v576 = vpow.pop %v575
    %v577 = vmul.f32 %v566, 1.442695
    %v578 = vpow.pop %v577
    %v579 = vmul.f32 %v567, 1.442695
    %v580 = vpow.pop %v579
    %v581 = vmul.f32 %v568, 1.442695
    %v582 = vpow.pop %v581
    %v583 = vmul.f32 %v569, 1.442695
    %v584 = vpow.pop %v583
    %v585 = vmul.f32 %v570, 1.442695
    %v586 = vpow.pop %v585
    %595 = vset.pattern.permute.xlu0 0
    %596 = vperm.xlu0 %595, %v572
    %v597 = vpop.permute.xlu0 %596
    %598 = vset.pattern.permute.xlu0 0
    %599 = vperm.xlu0 %598, %v574
    %v600 = vpop.permute.xlu0 %599
    %601 = vset.pattern.permute.xlu0 0
    %602 = vperm.xlu0 %601, %v576
    %v603 = vpop.permute.xlu0 %602
    %604 = vset.pattern.permute.xlu0 0
    %605 = vperm.xlu0 %604, %v578
    %v606 = vpop.permute.xlu0 %605
    %607 = vset.pattern.permute.xlu0 0
    %608 = vperm.xlu0 %607, %v580
    %v609 = vpop.permute.xlu0 %608
    %610 = vset.pattern.permute.xlu0 0
    %611 = vperm.xlu0 %610, %v582
    %v612 = vpop.permute.xlu0 %611
    %613 = vset.pattern.permute.xlu0 0
    %614 = vperm.xlu0 %613, %v584
    %v615 = vpop.permute.xlu0 %614
    %616 = vset.pattern.permute.xlu0 0
    %617 = vperm.xlu0 %616, %v586
    %v618 = vpop.permute.xlu0 %617
    %v619 = vlaneseq
    %v620 = vshrl.u32 %v619, 7
    %v621 = vsub.s32 %v470, %v620
    %v622 = vrot.slane %v597, %v621
    %v623 = vlaneseq
    %v624 = vshrl.u32 %v623, 7
    %v625 = vsub.s32 %v470, %v624
    %v626 = vrot.slane %v600, %v625
    %v627 = vlaneseq
    %v628 = vshrl.u32 %v627, 7
    %v629 = vsub.s32 %v470, %v628
    %v630 = vrot.slane %v603, %v629
    %v631 = vlaneseq
    %v632 = vshrl.u32 %v631, 7
    %v633 = vsub.s32 %v470, %v632
    %v634 = vrot.slane %v606, %v633
    %v635 = vlaneseq
    %v636 = vshrl.u32 %v635, 7
    %v637 = vsub.s32 %v470, %v636
    %v638 = vrot.slane %v609, %v637
    %v639 = vlaneseq
    %v640 = vshrl.u32 %v639, 7
    %v641 = vsub.s32 %v470, %v640
    %v642 = vrot.slane %v612, %v641
    %v643 = vlaneseq
    %v644 = vshrl.u32 %v643, 7
    %v645 = vsub.s32 %v470, %v644
    %v646 = vrot.slane %v615, %v645
    %v647 = vlaneseq
    %v648 = vshrl.u32 %v647, 7
    %v649 = vsub.s32 %v470, %v648
    %v650 = vrot.slane %v618, %v649
    %v651 = vsel %vm503, %v626, %v622
    %v652 = vsel %vm505, %v630, %v651
    %v653 = vsel %vm507, %v634, %v652
    %v654 = vsel %vm509, %v638, %v653
    %v655 = vsel %vm511, %v642, %v654
    %v656 = vsel %vm513, %v646, %v655
    %v657 = vsel %vm515, %v650, %v656
    %v659 = vsel %vm518, %v657, 0.0
    %660 = vadd.xlane.f32.xlu0 %v659
    %v661 = vpop.xlane.xlu0 %660
    %v662 = vrcp.pop %v661
    %v663 = vmul.f32 %v661, %v662
    %v664 = vsub.f32 2.0, %v663
    %v665 = vmul.f32 %v662, %v664
    %v667 = vlaneseq
    %v668 = vshrl.u32 %v667, 7
    %v669 = vsub.s32 0, %v668
    %v670 = vrot.slane %v665, %v669
    %v671 = vlaneseq
    %v672 = vshrl.u32 %v671, 7
    %v673 = vsub.s32 1, %v672
    %v674 = vrot.slane %v665, %v673
    %v675 = vlaneseq
    %v676 = vshrl.u32 %v675, 7
    %v677 = vsub.s32 2, %v676
    %v678 = vrot.slane %v665, %v677
    %v679 = vlaneseq
    %v680 = vshrl.u32 %v679, 7
    %v681 = vsub.s32 3, %v680
    %v682 = vrot.slane %v665, %v681
    %v683 = vlaneseq
    %v684 = vshrl.u32 %v683, 7
    %v685 = vsub.s32 4, %v684
    %v686 = vrot.slane %v665, %v685
    %v687 = vlaneseq
    %v688 = vshrl.u32 %v687, 7
    %v689 = vsub.s32 5, %v688
    %v690 = vrot.slane %v665, %v689
    %v691 = vlaneseq
    %v692 = vshrl.u32 %v691, 7
    %v693 = vsub.s32 6, %v692
    %v694 = vrot.slane %v665, %v693
    %v695 = vlaneseq
    %v696 = vshrl.u32 %v695, 7
    %v697 = vsub.s32 7, %v696
    %v698 = vrot.slane %v665, %v697
    %v707 = vmul.f32 %v572, %v670
    %v708 = vmul.f32 %v574, %v674
    %v709 = vmul.f32 %v576, %v678
    %v710 = vmul.f32 %v578, %v682
    %v711 = vmul.f32 %v580, %v686
    %v712 = vmul.f32 %v582, %v690
    %v713 = vmul.f32 %v584, %v694
    %v714 = vmul.f32 %v586, %v698
    %716 = vset.pattern.permute.xlu0 0
    %717 = vperm.xlu0 %716, %v707
    %v718 = vpop.permute.xlu0 %717
    %721 = vset.pattern.permute.xlu0 0
    %722 = vperm.xlu0 %721, %v708
    %v723 = vpop.permute.xlu0 %722
    %726 = vset.pattern.permute.xlu0 0
    %727 = vperm.xlu0 %726, %v709
    %v728 = vpop.permute.xlu0 %727
    %731 = vset.pattern.permute.xlu0 0
    %732 = vperm.xlu0 %731, %v710
    %v733 = vpop.permute.xlu0 %732
    %736 = vset.pattern.permute.xlu0 0
    %737 = vperm.xlu0 %736, %v711
    %v738 = vpop.permute.xlu0 %737
    %741 = vset.pattern.permute.xlu0 0
    %742 = vperm.xlu0 %741, %v712
    %v743 = vpop.permute.xlu0 %742
    %746 = vset.pattern.permute.xlu0 0
    %747 = vperm.xlu0 %746, %v713
    %v748 = vpop.permute.xlu0 %747
    %751 = vset.pattern.permute.xlu0 0
    %752 = vperm.xlu0 %751, %v714
    %v753 = vpop.permute.xlu0 %752
    %v755 = vmul.f32 %v192, %v718
    %v756 = vmul.f32 %v197, %v723
    %v757 = vmul.f32 %v202, %v728
    %v758 = vmul.f32 %v207, %v733
    %v759 = vmul.f32 %v212, %v738
    %v760 = vmul.f32 %v217, %v743
    %v761 = vmul.f32 %v222, %v748
    %v762 = vmul.f32 %v227, %v753
    %v763 = vsel %vm242, %v755, 0.0
    %v764 = vrot.slane %v763, 4
    %v765 = vadd.f32 %v763, %v764
    %v766 = vrot.slane %v765, 2
    %v767 = vadd.f32 %v765, %v766
    %v768 = vrot.slane %v767, 1
    %v769 = vadd.f32 %v767, %v768
    %v770 = vsel %vm242, %v756, 0.0
    %v771 = vrot.slane %v770, 4
    %v772 = vadd.f32 %v770, %v771
    %v773 = vrot.slane %v772, 2
    %v774 = vadd.f32 %v772, %v773
    %v775 = vrot.slane %v774, 1
    %v776 = vadd.f32 %v774, %v775
    %v777 = vsel %vm242, %v757, 0.0
    %v778 = vrot.slane %v777, 4
    %v779 = vadd.f32 %v777, %v778
    %v780 = vrot.slane %v779, 2
    %v781 = vadd.f32 %v779, %v780
    %v782 = vrot.slane %v781, 1
    %v783 = vadd.f32 %v781, %v782
    %v784 = vsel %vm242, %v758, 0.0
    %v785 = vrot.slane %v784, 4
    %v786 = vadd.f32 %v784, %v785
    %v787 = vrot.slane %v786, 2
    %v788 = vadd.f32 %v786, %v787
    %v789 = vrot.slane %v788, 1
    %v790 = vadd.f32 %v788, %v789
    %v791 = vsel %vm242, %v759, 0.0
    %v792 = vrot.slane %v791, 4
    %v793 = vadd.f32 %v791, %v792
    %v794 = vrot.slane %v793, 2
    %v795 = vadd.f32 %v793, %v794
    %v796 = vrot.slane %v795, 1
    %v797 = vadd.f32 %v795, %v796
    %v798 = vsel %vm242, %v760, 0.0
    %v799 = vrot.slane %v798, 4
    %v800 = vadd.f32 %v798, %v799
    %v801 = vrot.slane %v800, 2
    %v802 = vadd.f32 %v800, %v801
    %v803 = vrot.slane %v802, 1
    %v804 = vadd.f32 %v802, %v803
    %v805 = vsel %vm242, %v761, 0.0
    %v806 = vrot.slane %v805, 4
    %v807 = vadd.f32 %v805, %v806
    %v808 = vrot.slane %v807, 2
    %v809 = vadd.f32 %v807, %v808
    %v810 = vrot.slane %v809, 1
    %v811 = vadd.f32 %v809, %v810
    %v812 = vsel %vm242, %v762, 0.0
    %v813 = vrot.slane %v812, 4
    %v814 = vadd.f32 %v812, %v813
    %v815 = vrot.slane %v814, 2
    %v816 = vadd.f32 %v814, %v815
    %v817 = vrot.slane %v816, 1
    %v818 = vadd.f32 %v816, %v817
    %v827 = vsel %vm503, %v776, %v769
    %v828 = vsel %vm505, %v783, %v827
    %v829 = vsel %vm507, %v790, %v828
    %v830 = vsel %vm509, %v797, %v829
    %v831 = vsel %vm511, %v804, %v830
    %v832 = vsel %vm513, %v811, %v831
    %v833 = vsel %vm515, %v818, %v832
    %835 = vst.msk [vmem:[#allocation10] sm:$0xff] %vm242, %v833
    %v836 = vlaneseq
    %v837 = vshrl.u32 %v836, 7
    %v838 = vsub.s32 %v470, %v837
    %v839 = vrot.slane %v718, %v838
    %v840 = vlaneseq
    %v841 = vshrl.u32 %v840, 7
    %v842 = vsub.s32 %v470, %v841
    %v843 = vrot.slane %v723, %v842
    %v844 = vlaneseq
    %v845 = vshrl.u32 %v844, 7
    %v846 = vsub.s32 %v470, %v845
    %v847 = vrot.slane %v728, %v846
    %v848 = vlaneseq
    %v849 = vshrl.u32 %v848, 7
    %v850 = vsub.s32 %v470, %v849
    %v851 = vrot.slane %v733, %v850
    %v852 = vlaneseq
    %v853 = vshrl.u32 %v852, 7
    %v854 = vsub.s32 %v470, %v853
    %v855 = vrot.slane %v738, %v854
    %v856 = vlaneseq
    %v857 = vshrl.u32 %v856, 7
    %v858 = vsub.s32 %v470, %v857
    %v859 = vrot.slane %v743, %v858
    %v860 = vlaneseq
    %v861 = vshrl.u32 %v860, 7
    %v862 = vsub.s32 %v470, %v861
    %v863 = vrot.slane %v748, %v862
    %v864 = vlaneseq
    %v865 = vshrl.u32 %v864, 7
    %v866 = vsub.s32 %v470, %v865
    %v867 = vrot.slane %v753, %v866
    %v868 = vsel %vm503, %v843, %v839
    %v869 = vsel %vm505, %v847, %v868
    %v870 = vsel %vm507, %v851, %v869
    %v871 = vsel %vm509, %v855, %v870
    %v872 = vsel %vm511, %v859, %v871
    %v873 = vsel %vm513, %v863, %v872
    %v874 = vsel %vm515, %v867, %v873
    %876 = vst.msk [vmem:[#allocation11] sm:$0xff] %vm518, %v874
    // Predicated region
    $region46: #{tpu_custom_call.1} parent=1 // pred_check
      _
    $region47: #{tpu_custom_call.1} parent=1 // pred_check_branch
      %878 = sbr.rel (0) target = $region49
    $region48: #{tpu_custom_call.1} parent=1 // pred_region
      %s880 = ssub.s32 128, 128
      %881 = vsyncadd [#allocation4], %s880
      %s883 = sshll.u32 [#allocation10], 4
      %s884 = int_to_ptr.vmem [resolvable:$true] %s883
      %886 = dma.vmem_to_hbm [thread:$0]  %s884, 128, %s7, [#allocation4]
    $region49: #{tpu_custom_call.1} parent=1 // pred_fallthru
      _
    // Predicated region
    $region50: #{tpu_custom_call.1} parent=1 // pred_check
      _
    $region51: #{tpu_custom_call.1} parent=1 // pred_check_branch
      %888 = sbr.rel (0) target = $region53
    $region52: #{tpu_custom_call.1} parent=1 // pred_region
      %s890 = ssub.s32 128, 128
      %891 = vsyncadd [#allocation12], %s890
      %s893 = sshll.u32 [#allocation11], 4
      %s894 = int_to_ptr.vmem [resolvable:$true] %s893
      %896 = dma.vmem_to_hbm [thread:$0]  %s894, 128, %s8, [#allocation12]
    $region53: #{tpu_custom_call.1} parent=1 // pred_fallthru
      _
    // Predicated region
    $region54: #{tpu_custom_call.1} parent=1 // pred_check
      _
    $region55: #{tpu_custom_call.1} parent=1 // pred_check_branch
      %898 = sbr.rel (0) target = $region57
    $region56: #{tpu_custom_call.1} parent=1 // pred_region
      %899 = dma.done [#allocation4], 128
    $region57: #{tpu_custom_call.1} parent=1 // pred_fallthru
      _
    // Predicated region
    $region58: #{tpu_custom_call.1} parent=1 // pred_check
      _
    $region59: #{tpu_custom_call.1} parent=1 // pred_check_branch
      %901 = sbr.rel (0) target = $region61
    $region60: #{tpu_custom_call.1} parent=1 // pred_region
      %902 = dma.done [#allocation12], 128
    $region61: #{tpu_custom_call.1} parent=1 // pred_fallthru
      _
    %903 = vsyncpa [#allocation3], 1
    %904 = vsyncpa [#allocation6], 1
    %905 = vsyncpa [#allocation9], 1
    %906 = vsyncpa [#allocation4], 1
    %907 = vsyncpa [#allocation12], 1

</llo_original>
